<compile_context>
chip_gen: v5e
topology: v5e:2x2
jax: 0.10.0
libtpu: 0.0.40
codegen_flags: <defaults>
</compile_context>

<pallas_src>
import jax
import jax.numpy as jnp
from jax.experimental import pallas as pl
from jax.experimental.pallas import tpu as pltpu


# ----------------------------------------------------------------------------
# Helpers
# ----------------------------------------------------------------------------
def _round_up(x: int, m: int) -> int:
    return ((x + m - 1) // m) * m


def _largest_divisor_tile(n: int, step: int, cap: int) -> int:
    """Largest multiple of `step` that divides `n` and is <= cap (falls back to step)."""
    best = step
    t = step
    top = min(cap, n)
    while t <= top:
        if n % t == 0:
            best = t
        t += step
    return best


def _preferred_tn() -> int:
    """256-wide N tiles on v6e/v7x MXUs; 128 on v5e's 128-wide MXU."""
    try:
        info = pltpu.get_tpu_info()
        if "5" in str(getattr(info, "chip_version", "")):
            return 128
    except Exception:
        pass
    return 256


# ----------------------------------------------------------------------------
# Kernels
# ----------------------------------------------------------------------------
def _linear_fullk_kernel(x_ref, w_ref, b_ref, o_ref):
    # Whole contraction in one shot: dot + bias + store, nothing else.
    o_ref[...] = (
        jnp.dot(x_ref[...], w_ref[...], preferred_element_type=jnp.float32)
        + b_ref[...]
    ).astype(o_ref.dtype)


def _linear_ktiled_f32out_kernel(x_ref, w_ref, b_ref, o_ref):
    # Output block is resident across the k axis (index_map ignores k), so we
    # can accumulate directly into o_ref -- no scratch, no final copy.
    @pl.when(pl.program_id(2) == 0)
    def _init():
        o_ref[...] = jnp.broadcast_to(b_ref[...], o_ref.shape)

    o_ref[...] += jnp.dot(
        x_ref[...], w_ref[...], preferred_element_type=jnp.float32
    )


def _linear_ktiled_acc_kernel(x_ref, w_ref, b_ref, o_ref, acc_ref):
    k = pl.program_id(2)

    @pl.when(k == 0)
    def _init():
        acc_ref[...] = jnp.broadcast_to(b_ref[...], acc_ref.shape)

    acc_ref[...] += jnp.dot(
        x_ref[...], w_ref[...], preferred_element_type=jnp.float32
    )

    @pl.when(k == pl.num_programs(2) - 1)
    def _store():
        o_ref[...] = acc_ref[...].astype(o_ref.dtype)


# ----------------------------------------------------------------------------
# Wrapper
# ----------------------------------------------------------------------------
def classification_forward(
    x,
    weight,
    bias,
    *,
    tm=None,
    tn=None,
    tk=None,
    compute_dtype=None,          # e.g. jnp.bfloat16 for v6e/v7x opt-in
    force_k_tiling=False,        # force the K-tiled fallback (testing / huge D)
    vmem_budget_bytes=24 * 1024 * 1024,
):
    """x: (B, D), weight: (D, C), bias: (C,) -> logits (B, C)."""
    B, D = x.shape
    Dw, C = weight.shape
    assert D == Dw, (D, Dw)
    out_dtype = jnp.dtype(x.dtype)
    cdtype = jnp.dtype(compute_dtype) if compute_dtype is not None else out_dtype

    # ---- tile sizes --------------------------------------------------------
    Bp = _round_up(max(B, 1), 8)
    if tm is None:
        tm = _largest_divisor_tile(Bp, 8, 256)
    assert tm % 8 == 0 and Bp % tm == 0

    Cp = _round_up(max(C, 1), 128)
    if tn is None:
        tn = _largest_divisor_tile(Cp, 128, _preferred_tn())
    assert tn % 128 == 0 and Cp % tn == 0

    in_size = cdtype.itemsize
    out_size = out_dtype.itemsize

    # Full-K working set estimate: double-buffered x/W blocks + output + bias.
    fullk_bytes = (
        2 * (tm * D + D * tn) * in_size + 2 * tm * tn * out_size + 2 * tn * 4
    )
    use_fullk = (not force_k_tiling) and fullk_bytes <= vmem_budget_bytes

    # ---- operand prep (only pad what is strictly needed) -------------------
    xp = x if out_dtype == cdtype else x.astype(cdtype)
    wp = weight if jnp.dtype(weight.dtype) == cdtype else weight.astype(cdtype)
    bp = bias.astype(jnp.float32).reshape(1, C)

    if use_fullk:
        Dp = D  # block dims equal to the full array dim need no (8,128) padding
    else:
        if tk is None:
            tk = _largest_divisor_tile(D, 128, 1024)
            if D % tk != 0:
                tk = min(512, _round_up(D, 128))
        assert tk % 128 == 0
        Dp = _round_up(D, tk)

    if Bp != B or Dp != D:
        xp = jnp.pad(xp, ((0, Bp - B), (0, Dp - D)))
    if Dp != D or Cp != C:
        wp = jnp.pad(wp, ((0, Dp - D), (0, Cp - C)))
    if Cp != C:
        bp = jnp.pad(bp, ((0, 0), (0, Cp - C)))

    cost = pl.CostEstimate(
        flops=2 * B * D * C,
        transcendentals=0,
        bytes_accessed=(B * D + D * C) * in_size + (B * C + C) * out_size,
    )
    vmem_limit = 32 * 1024 * 1024  # safe scoped limit on v5e/v6e/v7x

    if use_fullk:
        out = pl.pallas_call(
            _linear_fullk_kernel,
            out_shape=jax.ShapeDtypeStruct((Bp, Cp), out_dtype),
            grid=(Bp // tm, Cp // tn),
            in_specs=[
                pl.BlockSpec((tm, Dp), lambda i, j: (i, 0)),   # x row tile, full K
                pl.BlockSpec((Dp, tn), lambda i, j: (0, j)),   # W col tile, full K
                pl.BlockSpec((1, tn), lambda i, j: (0, j)),    # bias per col tile
            ],
            out_specs=pl.BlockSpec((tm, tn), lambda i, j: (i, j)),
            compiler_params=pltpu.CompilerParams(
                dimension_semantics=("parallel", "parallel"),
                vmem_limit_bytes=vmem_limit,
            ),
            cost_estimate=cost,
        )(xp, wp, bp)
    else:
        grid = (Bp // tm, Cp // tn, Dp // tk)
        in_specs = [
            pl.BlockSpec((tm, tk), lambda i, j, k: (i, k)),
            pl.BlockSpec((tk, tn), lambda i, j, k: (k, j)),
            pl.BlockSpec((1, tn), lambda i, j, k: (0, j)),
        ]
        out_spec = pl.BlockSpec((tm, tn), lambda i, j, k: (i, j))
        cparams = pltpu.CompilerParams(
            dimension_semantics=("parallel", "parallel", "arbitrary"),
            vmem_limit_bytes=vmem_limit,
        )
        if out_dtype == jnp.dtype(jnp.float32):
            # Accumulate straight into the resident output block (no scratch).
            out = pl.pallas_call(
                _linear_ktiled_f32out_kernel,
                out_shape=jax.ShapeDtypeStruct((Bp, Cp), out_dtype),
                grid=grid,
                in_specs=in_specs,
                out_specs=out_spec,
                compiler_params=cparams,
                cost_estimate=cost,
            )(xp, wp, bp)
        else:
            out = pl.pallas_call(
                _linear_ktiled_acc_kernel,
                out_shape=jax.ShapeDtypeStruct((Bp, Cp), out_dtype),
                grid=grid,
                in_specs=in_specs,
                out_specs=out_spec,
                scratch_shapes=[pltpu.VMEM((tm, tn), jnp.float32)],
                compiler_params=cparams,
                cost_estimate=cost,
            )(xp, wp, bp)

    if Bp != B or Cp != C:
        out = out[:B, :C]
    return out


def xavier_uniform(key, shape):
    # nn.init.xavier_uniform_ on a (out_features, in_features) matrix.
    fan_out, fan_in = shape
    bound = (6.0 / (fan_in + fan_out)) ** 0.5
    return jax.random.uniform(key, shape, jnp.float32, -bound, bound)


if __name__ == "__main__":
    key = jax.random.PRNGKey(0)
    k1, k2, k3, k4 = jax.random.split(key, 4)

    # --- Test 1: module-sized shapes -> single-shot full-K kernel ----------
    batch, input_size, num_classes = 8, 32, 16
    w_pt = xavier_uniform(k2, (num_classes, input_size))    # PyTorch layout
    weight = jnp.transpose(w_pt)                            # (input_size, num_classes)
    bias = jnp.zeros((num_classes,), jnp.float32)
    x = jax.random.normal(k1, (batch, input_size), jnp.float32)

    logits = jax.block_until_ready(classification_forward(x, weight, bias))
    ref = x @ weight + bias[None, :]
    assert logits.shape == (batch, num_classes)
    assert jnp.allclose(logits, ref, atol=1e-5, rtol=1e-5)

    # --- Test 2: ragged batch + forced K-tiled accumulation path -----------
    batch2, d2, c2 = 12, 256, 10
    w2 = jnp.transpose(xavier_uniform(k4, (c2, d2)))
    b2 = jnp.zeros((c2,), jnp.float32)
    x2 = jax.random.normal(k3, (batch2, d2), jnp.float32)
    out2 = jax.block_until_ready(
        classification_forward(x2, w2, b2, tk=128, force_k_tiling=True)
    )
    ref2 = x2 @ w2 + b2[None, :]
    assert out2.shape == (batch2, c2)
    assert jnp.allclose(out2, ref2, atol=1e-4, rtol=1e-4)

    print("KERNEL_OK")
</pallas_src>

<mosaic_0001>
module attributes {stable_mosaic.version = 11 : i64} {
  func.func @_linear_fullk_kernel(%arg0: i32, %arg1: i32, %arg2: memref<8x32xf32, #tpu.memory_space<vmem>>, %arg3: memref<32x128xf32, #tpu.memory_space<vmem>>, %arg4: memref<1x128xf32, #tpu.memory_space<vmem>>, %arg5: memref<8x128xf32, #tpu.memory_space<vmem>>) attributes {dimension_semantics = [#tpu.dimension_semantics<parallel>, #tpu.dimension_semantics<parallel>], iteration_bounds = array<i64: 1, 1>, scalar_prefetch = 0 : i64, scratch_operands = 0 : i64, tpu.core_type = #tpu.core_type<tc>, window_params = [{transform_indices = @transform_0, window_bounds = array<i64: 8, 32>}, {transform_indices = @transform_1, window_bounds = array<i64: 32, 128>}, {transform_indices = @transform_2, window_bounds = array<i64: 1, 128>}, {transform_indices = @transform_3, window_bounds = array<i64: 8, 128>}]} {
    %c0 = arith.constant 0 : index
    %c0_0 = arith.constant 0 : index
    %0 = vector.load %arg2[%c0, %c0_0] : memref<8x32xf32, #tpu.memory_space<vmem>>, vector<8x32xf32>
    %c0_1 = arith.constant 0 : index
    %c0_2 = arith.constant 0 : index
    %1 = vector.load %arg3[%c0_1, %c0_2] : memref<32x128xf32, #tpu.memory_space<vmem>>, vector<32x128xf32>
    %cst = arith.constant dense<0.000000e+00> : vector<8x128xf32>
    %2 = tpu.matmul %0, %1, %cst {dimension_numbers = #tpu.dot_dimension_numbers<[1], [0], [0], [1], [0, 0, 1, 1], [], []>} : vector<8x32xf32>, vector<32x128xf32>, vector<8x128xf32> -> vector<8x128xf32>
    %c0_3 = arith.constant 0 : index
    %c0_4 = arith.constant 0 : index
    %3 = vector.load %arg4[%c0_3, %c0_4] : memref<1x128xf32, #tpu.memory_space<vmem>>, vector<1x128xf32>
    %4 = vector.broadcast %3 : vector<1x128xf32> to vector<8x128xf32>
    %5 = arith.addf %2, %4 : vector<8x128xf32>
    %c0_5 = arith.constant 0 : index
    %c0_6 = arith.constant 0 : index
    %6 = vector.load %arg5[%c0_5, %c0_6] : memref<8x128xf32, #tpu.memory_space<vmem>>, vector<8x128xf32>
    tpu.vector_store %arg5[%c0_5, %c0_6], %5 {strides = array<i32>} : memref<8x128xf32, #tpu.memory_space<vmem>>, vector<8x128xf32>,
    return
  }
  func.func @transform_0(%arg0: i32, %arg1: i32) -> (i32, i32) {
    %c0_i32 = arith.constant 0 : i32
    %c0_i32_0 = arith.constant 0 : i32
    return %arg0, %c0_i32 : i32, i32
  }
  func.func @transform_1(%arg0: i32, %arg1: i32) -> (i32, i32) {
    %c0_i32 = arith.constant 0 : i32
    %c0_i32_0 = arith.constant 0 : i32
    return %c0_i32, %arg1 : i32, i32
  }
  func.func @transform_2(%arg0: i32, %arg1: i32) -> (i32, i32) {
    %c0_i32 = arith.constant 0 : i32
    %c0_i32_0 = arith.constant 0 : i32
    return %c0_i32, %arg1 : i32, i32
  }
  func.func @transform_3(%arg0: i32, %arg1: i32) -> (i32, i32) {
    %c0_i32 = arith.constant 0 : i32
    return %arg0, %arg1 : i32, i32
  }
}

</mosaic_0001>

<llo_original>
// kernel: tpu_custom_call.1
$region0: #{tpu_custom_call.1}
  #allocation0 [shape = 'u32[]', space=smem, size = 0x4, offset = 0x4, fixed_abs, tag = 'smem constant byte address 0x4 - core index']
  #allocation1 [shape = 'u32[72,128]{1,0:T(1,128)}', space=vmem, size = 0x9000, scoped, tag = 'internal scratch']
  %s0 = inlined_call_operand.hbm [shape: f32[8,32], index: 0, kind: input, shape index: {}]
  %s1 = inlined_call_operand.hbm [shape: f32[32,128], index: 1, kind: input, shape index: {}]
  %s2 = inlined_call_operand.vmem [shape: f32[1,128], index: 2, kind: input, shape index: {}]
  %s3 = inlined_call_operand.hbm [shape: f32[8,128], index: 3, kind: output, shape index: {}]
  %s4 = sld [smem:[#allocation0]]
  $region30: #{tpu_custom_call.1} parent=0
    _
  %s6 = ssub.s32 1, %s4
  %s7 = scalar_select 0, %s6, %s4
  $region1: #{tpu_custom_call.1} parent=0
    #allocation2 [shape = 'u8[4096]{0}', space=vmem, size = 0x1000, scoped, tag = 'input window, operand 0, single buffered']
    #allocation3 [shape = 's32[1]{0}', space=sflag, size = 0x4, scoped, tag = 'scoped memory for tpu_custom_call.1']
    #allocation4 [shape = 's32[1]{0}', space=sflag, size = 0x4, scoped, tag = 'scoped memory for tpu_custom_call.1']
    #allocation5 [shape = 'u8[16384]{0}', space=vmem, size = 0x4000, scoped, tag = 'input window, operand 1, single buffered']
    #allocation6 [shape = 's32[1]{0}', space=sflag, size = 0x4, scoped, tag = 'scoped memory for tpu_custom_call.1']
    #allocation7 [shape = 'u8[4096]{0}', space=vmem, size = 0x1000, scoped, tag = 'output window, operand 0, single buffered']
    %8 = vsyncpa [#allocation3], 0
    %9 = vsyncpa [#allocation6], 0
    %10 = vsyncpa [#allocation4], 0
    // Predicated region
    $region2: #{tpu_custom_call.1} parent=1 // pred_check
      _
    $region3: #{tpu_custom_call.1} parent=1 // pred_check_branch
      %12 = sbr.rel (0) target = $region5
    $region4: #{tpu_custom_call.1} parent=1 // pred_region
      %14 = vsyncadd [#allocation3], 0
      %s16 = sshll.u32 %s0, 4
      %s17 = int_to_ptr.hbm [resolvable:$true] %s16
      %s18 = sshll.u32 [#allocation2], 4
      %s19 = int_to_ptr.vmem [resolvable:$true] %s18
      %21 = dma.hbm_to_vmem [thread:$0]  %s17, 128, %s19, [#allocation3]
    $region5: #{tpu_custom_call.1} parent=1 // pred_fallthru
      _
    // Predicated region
    $region6: #{tpu_custom_call.1} parent=1 // pred_check
      _
    $region7: #{tpu_custom_call.1} parent=1 // pred_check_branch
      %23 = sbr.rel (0) target = $region9
    $region8: #{tpu_custom_call.1} parent=1 // pred_region
      %25 = vsyncadd [#allocation6], 0
      %s26 = sshll.u32 %s1, 4
      %s27 = int_to_ptr.hbm [resolvable:$true] %s26
      %s28 = sshll.u32 [#allocation5], 4
      %s29 = int_to_ptr.vmem [resolvable:$true] %s28
      %34 = dma.hbm_to_vmem [thread:$0]  %s27, 512, %s29, [#allocation6], 128, 128, 8
    $region9: #{tpu_custom_call.1} parent=1 // pred_fallthru
      _
    // Predicated region
    $region10: #{tpu_custom_call.1} parent=1 // pred_check
      _
    $region11: #{tpu_custom_call.1} parent=1 // pred_check_branch
      %36 = sbr.rel (0) target = $region13
    $region12: #{tpu_custom_call.1} parent=1 // pred_region
      _
    $region13: #{tpu_custom_call.1} parent=1 // pred_fallthru
      _
    // Predicated region
    $region14: #{tpu_custom_call.1} parent=1 // pred_check
      _
    $region15: #{tpu_custom_call.1} parent=1 // pred_check_branch
      %38 = sbr.rel (0) target = $region17
    $region16: #{tpu_custom_call.1} parent=1 // pred_region
      %40 = dma.done [#allocation3], 128
    $region17: #{tpu_custom_call.1} parent=1 // pred_fallthru
      _
    // Predicated region
    $region18: #{tpu_custom_call.1} parent=1 // pred_check
      _
    $region19: #{tpu_custom_call.1} parent=1 // pred_check_branch
      %42 = sbr.rel (0) target = $region21
    $region20: #{tpu_custom_call.1} parent=1 // pred_region
      %44 = dma.done [#allocation6], 512
    $region21: #{tpu_custom_call.1} parent=1 // pred_fallthru
      _
    %v45 = vld [vmem:[#allocation2] sm:$0xff]
    %v46 = vld [vmem:[#allocation5] sm:$0xff]
    %v47 = vld [vmem:[#allocation5 + $0x8] sm:$0xff]
    %v48 = vld [vmem:[#allocation5 + $0x10] sm:$0xff]
    %v49 = vld [vmem:[#allocation5 + $0x18] sm:$0xff]
    %v50 = vld [vmem:[%s2] sm:$0x1]
    %v52 = vperm.slane %v50, 0
    %vm54 = vcmask 261120
    %v56 = vsel %vm54, %v45, 0
    %58 = vmatpush.msra.mxu0 0.0
    %59 = vmatpush.msra.mxu0 0.0
    %60 = vmatpush.msra.mxu0 0.0
    %61 = vmatpush.msra.mxu0 0.0
    %62 = vmatpush.msra.mxu0 0.0
    %63 = vmatpush.msra.mxu0 0.0
    %64 = vmatpush.msra.mxu0 0.0
    %65 = vmatpush.msra.mxu0 0.0
    %66 = vmatpush.msra.mxu0 0.0
    %67 = vmatpush.msra.mxu0 0.0
    %68 = vmatpush.msra.mxu0 0.0
    %69 = vmatpush.msra.mxu0 0.0
    %70 = vmatpush.msra.mxu0 %v49
    %71 = vmatpush.msra.mxu0 %v48
    %72 = vmatpush.msra.mxu0 %v47
    %73 = vmatpush.msra.mxu0 %v46
    %74 = vmatmul.f32.gmra.mxu0 %v56
    %v75 = vpop.f32.mrf.mxu0
    %v76 = vadd.f32 %v52, %v75
    %77 = vdwg.mxu0
    %78 = vst [vmem:[#allocation7] sm:$0xff] %v76
    // Predicated region
    $region22: #{tpu_custom_call.1} parent=1 // pred_check
      _
    $region23: #{tpu_custom_call.1} parent=1 // pred_check_branch
      %80 = sbr.rel (0) target = $region25
    $region24: #{tpu_custom_call.1} parent=1 // pred_region
      %82 = vsyncadd [#allocation4], 0
      %s84 = sshll.u32 [#allocation7], 4
      %s85 = int_to_ptr.vmem [resolvable:$true] %s84
      %s86 = sshll.u32 %s3, 4
      %s87 = int_to_ptr.hbm [resolvable:$true] %s86
      %89 = dma.vmem_to_hbm [thread:$0]  %s85, 128, %s87, [#allocation4]
    $region25: #{tpu_custom_call.1} parent=1 // pred_fallthru
      _
    // Predicated region
    $region26: #{tpu_custom_call.1} parent=1 // pred_check
      _
    $region27: #{tpu_custom_call.1} parent=1 // pred_check_branch
      %91 = sbr.rel (0) target = $region29
    $region28: #{tpu_custom_call.1} parent=1 // pred_region
      %93 = dma.done [#allocation4], 128
    $region29: #{tpu_custom_call.1} parent=1 // pred_fallthru
      _
    %94 = vsyncpa [#allocation3], 1
    %95 = vsyncpa [#allocation6], 1
    %96 = vsyncpa [#allocation4], 1

</llo_original>
